<compile_context>
chip_gen: v7x
topology: tpu7x:2x2x1
jax: 0.10.0
libtpu: 0.0.40
codegen_flags: <defaults>
</compile_context>

<pallas_src>
import functools

import jax
import jax.numpy as jnp
from jax.experimental import pallas as pl
from jax.experimental.pallas import tpu as pltpu


def _mish_math_f32(x):
    # tanh(softplus(x)) = (t^2 + 2t) / (t^2 + 2t + 2), t = exp(x), clamped so
    # exp never overflows.  For x > 20 PyTorch's softplus is exactly linear and
    # tanh(x > 20) == 1.0 in f32, so y = x there.
    t = jnp.exp(jnp.minimum(x, 20.0))
    num = t * (t + 2.0)
    y = x * (num / (num + 2.0))  # exact divide: free (HBM-bound), full f32 accuracy
    return jnp.where(x > 20.0, x, y)


def _mish_kernel(x_ref, o_ref):
    x = x_ref[...].astype(jnp.float32)
    o_ref[...] = _mish_math_f32(x).astype(o_ref.dtype)


def _round_up(a, b):
    return ((a + b - 1) // b) * b


@functools.partial(jax.jit, static_argnames=("compute_block_bytes",))
def mish(x, *, compute_block_bytes=8 * 1024 * 1024):
    """Elementwise Mish. Any shape; computed on a flat (rows, 128) slab."""
    orig_shape = x.shape
    orig_dtype = x.dtype
    n = x.size
    if n == 0:
        return x

    lanes = 128
    itemsize = jnp.dtype(orig_dtype).itemsize
    # Sublane packing multiple: f32 -> 8, bf16/f16 -> 16, int8/fp8 -> 32.
    pack = {1: 32, 2: 16}.get(itemsize, 8)

    x_flat = x.reshape(-1)
    tail = n % lanes
    n_main = n - tail

    # <=127-element tail handled with plain jnp (no whole-tensor pad/slice copy).
    tail_out = None
    if tail:
        tail_out = _mish_math_f32(
            x_flat[n_main:].astype(jnp.float32)
        ).astype(orig_dtype)

    if n_main == 0:
        return tail_out.reshape(orig_shape)

    rows = n_main // lanes
    x2d = x_flat[:n_main].reshape(rows, lanes)

    # Block sized by its f32 compute footprint (upcast inside the kernel),
    # rounded to the packing multiple.
    block_rows = max(pack, (compute_block_bytes // (lanes * 4)) // pack * pack)
    # v7x megacore: keep >= 2 grid steps for mid-sized tensors so the
    # "parallel" grid axis can be sharded across both TensorCores.
    if rows * lanes * 4 >= 2 * 1024 * 1024:
        block_rows = min(block_rows, _round_up(pl.cdiv(rows, 2), pack))
    if block_rows >= rows:
        block_rows = rows  # single full-extent block (always a legal shape)

    grid = (pl.cdiv(rows, block_rows),)

    out = pl.pallas_call(
        _mish_kernel,
        out_shape=jax.ShapeDtypeStruct((rows, lanes), orig_dtype),
        grid_spec=pltpu.PrefetchScalarGridSpec(
            num_scalar_prefetch=0,
            grid=grid,
            in_specs=[pl.BlockSpec((block_rows, lanes), lambda i: (i, 0))],
            out_specs=pl.BlockSpec((block_rows, lanes), lambda i: (i, 0)),
        ),
        compiler_params=pltpu.CompilerParams(
            dimension_semantics=("parallel",),
            # v5e scoped-VMEM default is 16 MiB; raise explicitly. 48 MiB keeps
            # headroom under v7x's 64 MiB physical VMEM.
            vmem_limit_bytes=48 * 1024 * 1024,
        ),
    )(x2d)

    out_flat = out.reshape(-1)
    if tail:
        return jnp.concatenate([out_flat, tail_out]).reshape(orig_shape)
    return out_flat.reshape(orig_shape)


def _mish_ref(x):
    xf = x.astype(jnp.float32)
    sp = jnp.where(xf > 20.0, xf, jnp.log1p(jnp.exp(jnp.minimum(xf, 20.0))))
    return (xf * jnp.tanh(sp)).astype(x.dtype)


if __name__ == "__main__":
    key = jax.random.PRNGKey(0)

    # Main case: NCHW activations, 128-aligned size -> pure kernel path.
    x = jax.random.normal(key, (2, 4, 16, 16), dtype=jnp.float32) * 3.0
    y = jax.block_until_ready(mish(x))
    y_ref = _mish_ref(x)
    assert y.shape == x.shape and y.dtype == x.dtype
    err = jnp.max(jnp.abs(y.astype(jnp.float32) - y_ref.astype(jnp.float32)))
    assert float(err) < 1e-4, f"mismatch vs reference: {float(err)}"

    # Ragged case: non-multiple-of-128 element count exercises prefix + jnp tail.
    x2 = jax.random.normal(jax.random.PRNGKey(1), (5, 7, 9), dtype=jnp.float32) * 5.0
    y2 = jax.block_until_ready(mish(x2))
    y2_ref = _mish_ref(x2)
    err2 = jnp.max(jnp.abs(y2.astype(jnp.float32) - y2_ref.astype(jnp.float32)))
    assert y2.shape == x2.shape and float(err2) < 1e-4, f"ragged mismatch: {float(err2)}"

    print("KERNEL_OK")
</pallas_src>

<mosaic_0001>
module attributes {stable_mosaic.version = 11 : i64} {
  func.func @_mish_kernel(%arg0: i32, %arg1: memref<16x128xf32, #tpu.memory_space<vmem>>, %arg2: memref<16x128xf32, #tpu.memory_space<vmem>>) attributes {dimension_semantics = [#tpu.dimension_semantics<parallel>], iteration_bounds = array<i64: 1>, scalar_prefetch = 0 : i64, scratch_operands = 0 : i64, tpu.core_type = #tpu.core_type<tc>, window_params = [{transform_indices = @transform_0, window_bounds = array<i64: 16, 128>}, {transform_indices = @transform_1, window_bounds = array<i64: 16, 128>}]} {
    %c0 = arith.constant 0 : index
    %c0_0 = arith.constant 0 : index
    %0 = vector.load %arg1[%c0, %c0_0] : memref<16x128xf32, #tpu.memory_space<vmem>>, vector<16x128xf32>
    %cst = arith.constant 2.000000e+01 : f32
    %1 = vector.broadcast %cst : f32 to vector<16x128xf32>
    %2 = arith.minimumf %0, %1 : vector<16x128xf32>
    %3 = math.exp %2 : vector<16x128xf32>
    %cst_1 = arith.constant 2.000000e+00 : f32
    %4 = vector.broadcast %cst_1 : f32 to vector<16x128xf32>
    %5 = arith.addf %3, %4 : vector<16x128xf32>
    %6 = arith.mulf %3, %5 : vector<16x128xf32>
    %cst_2 = arith.constant 2.000000e+00 : f32
    %7 = vector.broadcast %cst_2 : f32 to vector<16x128xf32>
    %8 = arith.addf %6, %7 : vector<16x128xf32>
    %9 = arith.divf %6, %8 : vector<16x128xf32>
    %10 = arith.mulf %0, %9 : vector<16x128xf32>
    %cst_3 = arith.constant 2.000000e+01 : f32
    %11 = vector.broadcast %cst_3 : f32 to vector<16x128xf32>
    %12 = arith.cmpf ogt, %0, %11 : vector<16x128xf32>
    %13 = arith.select %12, %0, %10 : vector<16x128xi1>, vector<16x128xf32>
    %c0_4 = arith.constant 0 : index
    %c0_5 = arith.constant 0 : index
    %14 = vector.load %arg2[%c0_4, %c0_5] : memref<16x128xf32, #tpu.memory_space<vmem>>, vector<16x128xf32>
    tpu.vector_store %arg2[%c0_4, %c0_5], %13 {strides = array<i32>} : memref<16x128xf32, #tpu.memory_space<vmem>>, vector<16x128xf32>,
    return
  }
  func.func @transform_0(%arg0: i32) -> (i32, i32) {
    %c0_i32 = arith.constant 0 : i32
    %c0_i32_0 = arith.constant 0 : i32
    return %arg0, %c0_i32 : i32, i32
  }
  func.func @transform_1(%arg0: i32) -> (i32, i32) {
    %c0_i32 = arith.constant 0 : i32
    %c0_i32_0 = arith.constant 0 : i32
    return %arg0, %c0_i32 : i32, i32
  }
}

</mosaic_0001>

<llo_original>
// kernel: mish.1
$region0: #{mish.1}
  #allocation0 [shape = 'u32[]', space=smem, size = 0x4, offset = 0x4, fixed_abs, tag = 'smem constant byte address 0x4 - core index']
  #allocation1 [shape = 'u32[144,128]{1,0:T(1,128)}', space=vmem, size = 0x12000, scoped, tag = 'internal scratch']
  %s0 = inlined_call_operand.vmem [shape: f32[16,128], index: 0, kind: input, shape index: {}]
  %s1 = inlined_call_operand.vmem [shape: f32[16,128], index: 1, kind: output, shape index: {}]
  %s2 = sld [smem:[#allocation0]]
  $region14: #{mish.1} parent=0
    _
  %s4 = ssub.s32 1, %s2
  %s5 = scalar_select 0, %s4, %s2
  // Predicated region
  $region2: #{mish.1} parent=0 // pred_check
    _
  $region3: #{mish.1} parent=0 // pred_check_branch
    %7 = sbr.rel (0) target = $region5
  $region4: #{mish.1} parent=0 // pred_region
    _
  $region5: #{mish.1} parent=0 // pred_fallthru
    _
  %v8 = vld [vmem:[%s0] sm:$0xff]
  %v9 = vld [vmem:[%s0 + $0x8] sm:$0xff]
  %v10 = vmin.f32 %v8, 20.0
  %v11 = vmin.f32 %v9, 20.0
  %v12 = vmul.f32 %v10, 1.442695
  %v13 = vpow.pop %v12
  %v14 = vmul.f32 %v11, 1.442695
  %v15 = vpow.pop %v14
  %v16 = vadd.f32 %v13, 2.0
  %v17 = vadd.f32 %v15, 2.0
  %v18 = vmul.f32 %v13, %v16
  %v19 = vmul.f32 %v15, %v17
  %v20 = vadd.f32 %v18, 2.0
  %v21 = vadd.f32 %v19, 2.0
  %v22 = vrcp.pop %v20
  %v23 = vmul.f32 %v18, %v22
  %v24 = vrcp.pop %v21
  %v25 = vmul.f32 %v19, %v24
  %v26 = vmul.f32 %v8, %v23
  %v27 = vmul.f32 %v9, %v25
  %vm28 = vcmp.gt.f32.partialorder %v8, 20.0
  %vm29 = vcmp.gt.f32.partialorder %v9, 20.0
  %v30 = vsel %vm28, %v8, %v26
  %v31 = vsel %vm29, %v9, %v27
  %32 = vst [vmem:[%s1] sm:$0xff] %v30
  %33 = vst [vmem:[%s1 + $0x8] sm:$0xff] %v31
  // Predicated region
  $region6: #{mish.1} parent=0 // pred_check
    _
  $region7: #{mish.1} parent=0 // pred_check_branch
    %35 = sbr.rel (0) target = $region9
  $region8: #{mish.1} parent=0 // pred_region
    _
  $region9: #{mish.1} parent=0 // pred_fallthru
    _
  // Predicated region
  $region10: #{mish.1} parent=0 // pred_check
    _
  $region11: #{mish.1} parent=0 // pred_check_branch
    %37 = sbr.rel (0) target = $region13
  $region12: #{mish.1} parent=0 // pred_region
    _
  $region13: #{mish.1} parent=0 // pred_fallthru
    _

</llo_original>
